<compile_context>
chip_gen: v7x
topology: tpu7x:2x2x1
jax: 0.10.0
libtpu: 0.0.40
codegen_flags: <defaults>
</compile_context>

<pallas_src>
import jax
import jax.numpy as jnp
from jax.experimental import pallas as pl
from jax.experimental.pallas import tpu as pltpu


# ----------------------------- kernel ---------------------------------------


def _fused_mlp_kernel(rnn_ref, w1_ref, b1_ref, wx2_ref, wy2_ref,
                      bx2_ref, by2_ref, out_ref):
    """out = [ LeakyReLU(r@wx1+bx1)@wx2+bx2 | LeakyReLU(r@wy1+by1)@wy2+by2 ]."""
    R = w1_ref.shape[0]
    n_pad = wx2_ref.shape[1]

    # Fused first layer (both branches), bf16 MXU inputs, f32 accumulation.
    r = rnn_ref[...].astype(jnp.bfloat16)
    h = jnp.dot(r, w1_ref[...], preferred_element_type=jnp.float32) + b1_ref[...]
    h = jnp.maximum(h, 0.01 * h)                      # LeakyReLU(0.01), f32, VPU max
    hb = h.astype(jnp.bfloat16)

    # Two branch dots sharing h; each store is a lane-aligned (multiple-of-128)
    # full-width slab of the output block.
    x = jnp.dot(hb[:, :R], wx2_ref[...], preferred_element_type=jnp.float32) + bx2_ref[...]
    y = jnp.dot(hb[:, R:], wy2_ref[...], preferred_element_type=jnp.float32) + by2_ref[...]
    out_ref[:, :n_pad] = x.astype(out_ref.dtype)
    out_ref[:, n_pad:] = y.astype(out_ref.dtype)


# ----------------------------- wrapper ---------------------------------------


def relative_position_predictor_forward(rnn_out, packed, *, block_b=1024):
    """rnn_out: [B, rnn_size] f32. Returns [B, 4*max_value] f32 logits [x | y]."""
    B, R = rnn_out.shape
    w1, b1 = packed["w1"], packed["b1"]
    wx2, wy2 = packed["wx2"], packed["wy2"]
    bx2, by2 = packed["bx2"], packed["by2"]
    n, n_pad = packed["n"], packed["n_pad"]           # valid / lane-padded per branch
    out_pad = 2 * n_pad

    # Batch tiling: single block at small B; tile + parallel grid at large B.
    # (v7x note: re-derive block_b so 2x act tile + 2x out tile + weights fit
    #  the per-TC 64 MiB; last ragged block reads OOB rows of rnn_out which is
    #  benign for this row-wise computation.)
    tb = B if B <= block_b else block_b
    grid = (pl.cdiv(B, tb),)

    # FLOPs: fused layer-1 + two layer-2 branch dots.
    flops = 2 * B * R * (2 * R) + 2 * (2 * B * R * n_pad)
    bytes_accessed = (
        4 * rnn_out.size                                  # f32 activations
        + 2 * (w1.size + wx2.size + wy2.size)             # bf16 weights
        + 4 * (b1.size + bx2.size + by2.size)             # f32 biases
        + 4 * B * out_pad                                 # f32 output
    )
    cost = pl.CostEstimate(flops=flops, transcendentals=0,
                           bytes_accessed=bytes_accessed)

    # Scoped VMEM: 2x act tile + 2x out tile (double-buffered) + single-buffered
    # weights/biases, with headroom; capped below per-TC physical VMEM (v7x 64 MiB).
    vmem_needed = (
        2 * tb * R * 4 + 2 * tb * out_pad * 4
        + 2 * (w1.size + wx2.size + wy2.size)
        + 4 * (b1.size + bx2.size + by2.size)
    )
    vmem_limit = min(int(vmem_needed * 1.3) + (4 << 20), 64 << 20)

    resident = dict(pipeline_mode=pl.Buffered(1))     # constant blocks: single-buffer

    out_padded = pl.pallas_call(
        _fused_mlp_kernel,
        out_shape=jax.ShapeDtypeStruct((B, out_pad), jnp.float32),
        grid_spec=pltpu.PrefetchScalarGridSpec(
            num_scalar_prefetch=0,
            grid=grid,
            in_specs=[
                pl.BlockSpec((tb, R), lambda i: (i, 0)),            # activations: tiled
                pl.BlockSpec(w1.shape, lambda i: (0, 0), **resident),
                pl.BlockSpec(b1.shape, lambda i: (0, 0), **resident),
                pl.BlockSpec(wx2.shape, lambda i: (0, 0), **resident),
                pl.BlockSpec(wy2.shape, lambda i: (0, 0), **resident),
                pl.BlockSpec(bx2.shape, lambda i: (0, 0), **resident),
                pl.BlockSpec(by2.shape, lambda i: (0, 0), **resident),
            ],
            out_specs=pl.BlockSpec((tb, out_pad), lambda i: (i, 0)),
        ),
        compiler_params=pltpu.CompilerParams(
            dimension_semantics=("parallel",),
            vmem_limit_bytes=vmem_limit,
        ),
        cost_estimate=cost,
    )(rnn_out, w1, b1, wx2, wy2, bx2, by2)

    if n == n_pad:
        # 2*max_value is already lane-aligned: kernel output is exactly [x | y].
        return out_padded
    # Strip per-branch lane padding outside the kernel (kept lane-dense inside).
    return jnp.concatenate(
        [out_padded[:, :n], out_padded[:, n_pad:n_pad + n]], axis=1
    )


# ----------------------------- params ----------------------------------------


def _init_linear(key, fan_in, fan_out):
    """PyTorch-style Linear init; weight stored as [in, out] for row-major matmul."""
    kw, kb = jax.random.split(key)
    bound = 1.0 / jnp.sqrt(jnp.asarray(fan_in, jnp.float32))
    w = jax.random.uniform(kw, (fan_in, fan_out), jnp.float32, -bound, bound)
    b = jax.random.uniform(kb, (1, fan_out), jnp.float32, -bound, bound)
    return w, b


def make_params(key, rnn_size, max_value):
    k = jax.random.split(key, 4)
    wx1, bx1 = _init_linear(k[0], rnn_size, rnn_size)
    wx2, bx2 = _init_linear(k[1], rnn_size, max_value * 2)
    wy1, by1 = _init_linear(k[2], rnn_size, rnn_size)
    wy2, by2 = _init_linear(k[3], rnn_size, max_value * 2)
    return dict(wx1=wx1, bx1=bx1, wx2=wx2, bx2=bx2,
                wy1=wy1, by1=by1, wy2=wy2, by2=by2)


def pack_params(params, *, lane=128):
    """Host-side fusion: concat W1/b1 (bf16/f32), lane-pad per-branch W2/b2."""
    n = params["wx2"].shape[1]                       # 2 * max_value per branch
    n_pad = ((n + lane - 1) // lane) * lane

    w1 = jnp.concatenate([params["wx1"], params["wy1"]], axis=1).astype(jnp.bfloat16)
    b1 = jnp.concatenate([params["bx1"], params["by1"]], axis=1)            # f32

    def pad_w(w):   # [R, n] -> [R, n_pad] bf16 (padded columns are zero)
        return jnp.pad(w, ((0, 0), (0, n_pad - n))).astype(jnp.bfloat16)

    def pad_b(b):   # [1, n] -> [1, n_pad] f32
        return jnp.pad(b, ((0, 0), (0, n_pad - n)))

    return dict(
        w1=w1, b1=b1,
        wx2=pad_w(params["wx2"]), wy2=pad_w(params["wy2"]),
        bx2=pad_b(params["bx2"]), by2=pad_b(params["by2"]),
        n=n, n_pad=n_pad,
    )


# ----------------------------- reference & test -------------------------------


def _reference_forward(rnn_out, p, *, bf16):
    """Pure-JAX reference; bf16=True mirrors the kernel's mixed-precision math."""
    def cast(a):
        return a.astype(jnp.bfloat16) if bf16 else a

    def branch(w1, b1, w2, b2):
        h = jnp.dot(cast(rnn_out), cast(w1), preferred_element_type=jnp.float32) + b1
        h = jnp.maximum(h, 0.01 * h)
        return jnp.dot(cast(h), cast(w2), preferred_element_type=jnp.float32) + b2

    x = branch(p["wx1"], p["bx1"], p["wx2"], p["bx2"])
    y = branch(p["wy1"], p["by1"], p["wy2"], p["by2"])
    return jnp.concatenate([x, y], axis=1)


if __name__ == "__main__":
    key = jax.random.PRNGKey(0)
    k_params, k_rnn = jax.random.split(key)

    B = 8            # batch
    RNN_SIZE = 32    # rnn hidden size
    MAX_VALUE = 16   # each branch -> 2*MAX_VALUE = 32 logits, concat = 64

    params = make_params(k_params, RNN_SIZE, MAX_VALUE)
    packed = pack_params(params)
    rnn_out = jax.random.normal(k_rnn, (B, RNN_SIZE), jnp.float32)

    out = relative_position_predictor_forward(rnn_out, packed)
    out = jax.block_until_ready(out)
    assert out.shape == (B, 4 * MAX_VALUE), out.shape

    # Tight check vs a reference that mirrors the kernel's bf16-dot / f32-acc math.
    ref_bf16 = _reference_forward(rnn_out, params, bf16=True)
    assert jnp.allclose(out, ref_bf16, atol=5e-3, rtol=5e-3), "mismatch vs bf16 reference"

    # Loose semantic check vs the pure-f32 PyTorch-equivalent reference.
    ref_f32 = _reference_forward(rnn_out, params, bf16=False)
    assert jnp.allclose(out, ref_f32, atol=5e-2, rtol=5e-2), "mismatch vs f32 reference"

    print("KERNEL_OK")
</pallas_src>

<mosaic_0001>
module attributes {stable_mosaic.version = 11 : i64} {
  func.func @_fused_mlp_kernel(%arg0: i32, %arg1: memref<8x32xf32, #tpu.memory_space<vmem>>, %arg2: memref<32x64xbf16, #tpu.memory_space<vmem>>, %arg3: memref<1x64xf32, #tpu.memory_space<vmem>>, %arg4: memref<32x128xbf16, #tpu.memory_space<vmem>>, %arg5: memref<32x128xbf16, #tpu.memory_space<vmem>>, %arg6: memref<1x128xf32, #tpu.memory_space<vmem>>, %arg7: memref<1x128xf32, #tpu.memory_space<vmem>>, %arg8: memref<8x256xf32, #tpu.memory_space<vmem>>) attributes {dimension_semantics = [#tpu.dimension_semantics<parallel>], iteration_bounds = array<i64: 1>, scalar_prefetch = 0 : i64, scratch_operands = 0 : i64, tpu.core_type = #tpu.core_type<tc>, window_params = [{transform_indices = @transform_0, window_bounds = array<i64: 8, 32>}, {pipeline_mode = #tpu.pipeline_mode<synchronous>, transform_indices = @transform_1, window_bounds = array<i64: 32, 64>}, {pipeline_mode = #tpu.pipeline_mode<synchronous>, transform_indices = @transform_2, window_bounds = array<i64: 1, 64>}, {pipeline_mode = #tpu.pipeline_mode<synchronous>, transform_indices = @transform_3, window_bounds = array<i64: 32, 128>}, {pipeline_mode = #tpu.pipeline_mode<synchronous>, transform_indices = @transform_4, window_bounds = array<i64: 32, 128>}, {pipeline_mode = #tpu.pipeline_mode<synchronous>, transform_indices = @transform_5, window_bounds = array<i64: 1, 128>}, {pipeline_mode = #tpu.pipeline_mode<synchronous>, transform_indices = @transform_6, window_bounds = array<i64: 1, 128>}, {transform_indices = @transform_7, window_bounds = array<i64: 8, 256>}]} {
    %c0 = arith.constant 0 : index
    %c0_0 = arith.constant 0 : index
    %0 = vector.load %arg1[%c0, %c0_0] : memref<8x32xf32, #tpu.memory_space<vmem>>, vector<8x32xf32>
    %1 = arith.truncf %0 : vector<8x32xf32> to vector<8x32xbf16>
    %c0_1 = arith.constant 0 : index
    %c0_2 = arith.constant 0 : index
    %2 = vector.load %arg2[%c0_1, %c0_2] : memref<32x64xbf16, #tpu.memory_space<vmem>>, vector<32x64xbf16>
    %cst = arith.constant dense<0.000000e+00> : vector<8x64xf32>
    %3 = tpu.matmul %1, %2, %cst {dimension_numbers = #tpu.dot_dimension_numbers<[1], [0], [0], [1], [0, 0, 1, 1], [], []>} : vector<8x32xbf16>, vector<32x64xbf16>, vector<8x64xf32> -> vector<8x64xf32>
    %c0_3 = arith.constant 0 : index
    %c0_4 = arith.constant 0 : index
    %4 = vector.load %arg3[%c0_3, %c0_4] : memref<1x64xf32, #tpu.memory_space<vmem>>, vector<1x64xf32>
    %5 = vector.broadcast %4 : vector<1x64xf32> to vector<8x64xf32>
    %6 = arith.addf %3, %5 : vector<8x64xf32>
    %cst_5 = arith.constant 0.00999999977 : f32
    %7 = vector.broadcast %cst_5 : f32 to vector<8x64xf32>
    %8 = arith.mulf %7, %6 : vector<8x64xf32>
    %9 = arith.maximumf %6, %8 : vector<8x64xf32>
    %10 = arith.truncf %9 : vector<8x64xf32> to vector<8x64xbf16>
    %11 = vector.extract_strided_slice %10 {offsets = [0, 0], sizes = [8, 32], strides = [1, 1]} : vector<8x64xbf16> to vector<8x32xbf16>
    %c0_6 = arith.constant 0 : index
    %c0_7 = arith.constant 0 : index
    %12 = vector.load %arg4[%c0_6, %c0_7] : memref<32x128xbf16, #tpu.memory_space<vmem>>, vector<32x128xbf16>
    %cst_8 = arith.constant dense<0.000000e+00> : vector<8x128xf32>
    %13 = tpu.matmul %11, %12, %cst_8 {dimension_numbers = #tpu.dot_dimension_numbers<[1], [0], [0], [1], [0, 0, 1, 1], [], []>} : vector<8x32xbf16>, vector<32x128xbf16>, vector<8x128xf32> -> vector<8x128xf32>
    %c0_9 = arith.constant 0 : index
    %c0_10 = arith.constant 0 : index
    %14 = vector.load %arg6[%c0_9, %c0_10] : memref<1x128xf32, #tpu.memory_space<vmem>>, vector<1x128xf32>
    %15 = vector.broadcast %14 : vector<1x128xf32> to vector<8x128xf32>
    %16 = arith.addf %13, %15 : vector<8x128xf32>
    %17 = vector.extract_strided_slice %10 {offsets = [0, 32], sizes = [8, 32], strides = [1, 1]} : vector<8x64xbf16> to vector<8x32xbf16>
    %c0_11 = arith.constant 0 : index
    %c0_12 = arith.constant 0 : index
    %18 = vector.load %arg5[%c0_11, %c0_12] : memref<32x128xbf16, #tpu.memory_space<vmem>>, vector<32x128xbf16>
    %cst_13 = arith.constant dense<0.000000e+00> : vector<8x128xf32>
    %19 = tpu.matmul %17, %18, %cst_13 {dimension_numbers = #tpu.dot_dimension_numbers<[1], [0], [0], [1], [0, 0, 1, 1], [], []>} : vector<8x32xbf16>, vector<32x128xbf16>, vector<8x128xf32> -> vector<8x128xf32>
    %c0_14 = arith.constant 0 : index
    %c0_15 = arith.constant 0 : index
    %20 = vector.load %arg7[%c0_14, %c0_15] : memref<1x128xf32, #tpu.memory_space<vmem>>, vector<1x128xf32>
    %21 = vector.broadcast %20 : vector<1x128xf32> to vector<8x128xf32>
    %22 = arith.addf %19, %21 : vector<8x128xf32>
    %c0_16 = arith.constant 0 : index
    %c0_17 = arith.constant 0 : index
    %23 = vector.load %arg8[%c0_16, %c0_17] : memref<8x256xf32, #tpu.memory_space<vmem>>, vector<8x128xf32>
    tpu.vector_store %arg8[%c0_16, %c0_17], %16 {strides = array<i32>} : memref<8x256xf32, #tpu.memory_space<vmem>>, vector<8x128xf32>,
    %c0_18 = arith.constant 0 : index
    %c128 = arith.constant 128 : index
    %24 = vector.load %arg8[%c0_18, %c128] : memref<8x256xf32, #tpu.memory_space<vmem>>, vector<8x128xf32>
    tpu.vector_store %arg8[%c0_18, %c128], %22 {strides = array<i32>} : memref<8x256xf32, #tpu.memory_space<vmem>>, vector<8x128xf32>,
    return
  }
  func.func @transform_0(%arg0: i32) -> (i32, i32) {
    %c0_i32 = arith.constant 0 : i32
    %c0_i32_0 = arith.constant 0 : i32
    return %arg0, %c0_i32 : i32, i32
  }
  func.func @transform_1(%arg0: i32) -> (i32, i32) {
    %c0_i32 = arith.constant 0 : i32
    %c0_i32_0 = arith.constant 0 : i32
    %c0_i32_1 = arith.constant 0 : i32
    return %c0_i32, %c0_i32_0 : i32, i32
  }
  func.func @transform_2(%arg0: i32) -> (i32, i32) {
    %c0_i32 = arith.constant 0 : i32
    %c0_i32_0 = arith.constant 0 : i32
    %c0_i32_1 = arith.constant 0 : i32
    return %c0_i32, %c0_i32_0 : i32, i32
  }
  func.func @transform_3(%arg0: i32) -> (i32, i32) {
    %c0_i32 = arith.constant 0 : i32
    %c0_i32_0 = arith.constant 0 : i32
    %c0_i32_1 = arith.constant 0 : i32
    return %c0_i32, %c0_i32_0 : i32, i32
  }
  func.func @transform_4(%arg0: i32) -> (i32, i32) {
    %c0_i32 = arith.constant 0 : i32
    %c0_i32_0 = arith.constant 0 : i32
    %c0_i32_1 = arith.constant 0 : i32
    return %c0_i32, %c0_i32_0 : i32, i32
  }
  func.func @transform_5(%arg0: i32) -> (i32, i32) {
    %c0_i32 = arith.constant 0 : i32
    %c0_i32_0 = arith.constant 0 : i32
    %c0_i32_1 = arith.constant 0 : i32
    return %c0_i32, %c0_i32_0 : i32, i32
  }
  func.func @transform_6(%arg0: i32) -> (i32, i32) {
    %c0_i32 = arith.constant 0 : i32
    %c0_i32_0 = arith.constant 0 : i32
    %c0_i32_1 = arith.constant 0 : i32
    return %c0_i32, %c0_i32_0 : i32, i32
  }
  func.func @transform_7(%arg0: i32) -> (i32, i32) {
    %c0_i32 = arith.constant 0 : i32
    %c0_i32_0 = arith.constant 0 : i32
    return %arg0, %c0_i32 : i32, i32
  }
}

</mosaic_0001>

<llo_original>
// kernel: tpu_custom_call.1
$region0: #{tpu_custom_call.1}
  #allocation0 [shape = 'u32[]', space=smem, size = 0x4, offset = 0x4, fixed_abs, tag = 'smem constant byte address 0x4 - core index']
  #allocation1 [shape = 'u32[144,128]{1,0:T(1,128)}', space=vmem, size = 0x12000, scoped, tag = 'internal scratch']
  %s0 = inlined_call_operand.hbm [shape: f32[8,32], index: 0, kind: input, shape index: {}]
  %s1 = inlined_call_operand.hbm [shape: bf16[32,64], index: 1, kind: input, shape index: {}]
  %s2 = inlined_call_operand.vmem [shape: f32[1,64], index: 2, kind: input, shape index: {}]
  %s3 = inlined_call_operand.hbm [shape: bf16[32,128], index: 3, kind: input, shape index: {}]
  %s4 = inlined_call_operand.hbm [shape: bf16[32,128], index: 4, kind: input, shape index: {}]
  %s5 = inlined_call_operand.vmem [shape: f32[1,128], index: 5, kind: input, shape index: {}]
  %s6 = inlined_call_operand.vmem [shape: f32[1,128], index: 6, kind: input, shape index: {}]
  %s7 = inlined_call_operand.hbm [shape: f32[8,256], index: 7, kind: output, shape index: {}]
  %s8 = sld [smem:[#allocation0]]
  $region54: #{tpu_custom_call.1} parent=0
    _
  %s10 = ssub.s32 1, %s8
  %s11 = scalar_select 0, %s10, %s8
  $region1: #{tpu_custom_call.1} parent=0
    #allocation2 [shape = 'u8[4096]{0}', space=vmem, size = 0x1000, scoped, tag = 'input window, operand 0, single buffered']
    #allocation3 [shape = 's32[1]{0}', space=sflag, size = 0x4, scoped, tag = 'scoped memory for tpu_custom_call.1']
    #allocation4 [shape = 's32[1]{0}', space=sflag, size = 0x4, scoped, tag = 'scoped memory for tpu_custom_call.1']
    #allocation5 [shape = 'u8[8192]{0}', space=vmem, size = 0x2000, scoped, tag = 'input window, operand 1, single buffered']
    #allocation6 [shape = 's32[1]{0}', space=sflag, size = 0x4, scoped, tag = 'scoped memory for tpu_custom_call.1']
    #allocation7 [shape = 'u8[8192]{0}', space=vmem, size = 0x2000, scoped, tag = 'input window, operand 3, single buffered']
    #allocation8 [shape = 'u8[8192]{0}', space=vmem, size = 0x2000, scoped, tag = 'input window, operand 4, single buffered']
    #allocation9 [shape = 's32[1]{0}', space=sflag, size = 0x4, scoped, tag = 'scoped memory for tpu_custom_call.1']
    #allocation10 [shape = 'u8[8192]{0}', space=vmem, size = 0x2000, scoped, tag = 'output window, operand 0, single buffered']
    %12 = vsyncpa [#allocation3], 0
    %13 = vsyncpa [#allocation6], 0
    %14 = vsyncpa [#allocation9], 0
    %15 = vsyncpa [#allocation4], 0
    // Predicated region
    $region2: #{tpu_custom_call.1} parent=1 // pred_check
      _
    $region3: #{tpu_custom_call.1} parent=1 // pred_check_branch
      %17 = sbr.rel (0) target = $region5
    $region4: #{tpu_custom_call.1} parent=1 // pred_region
      %s19 = ssub.s32 128, 128
      %20 = vsyncadd [#allocation3], %s19
      %s22 = sshll.u32 [#allocation2], 4
      %s23 = int_to_ptr.vmem [resolvable:$true] %s22
      %25 = dma.hbm_to_vmem [thread:$0]  %s0, 128, %s23, [#allocation3]
    $region5: #{tpu_custom_call.1} parent=1 // pred_fallthru
      _
    // Predicated region
    $region6: #{tpu_custom_call.1} parent=1 // pred_check
      _
    $region7: #{tpu_custom_call.1} parent=1 // pred_check_branch
      %27 = sbr.rel (0) target = $region9
    $region8: #{tpu_custom_call.1} parent=1 // pred_region
      %s29 = ssub.s32 256, 256
      %30 = vsyncadd [#allocation6], %s29
      %s31 = sshll.u32 [#allocation5], 4
      %s32 = int_to_ptr.vmem [resolvable:$true] %s31
      %37 = dma.hbm_to_vmem [thread:$0]  %s1, 256, %s32, [#allocation6], 64, 64, 4
    $region9: #{tpu_custom_call.1} parent=1 // pred_fallthru
      _
    // Predicated region
    $region10: #{tpu_custom_call.1} parent=1 // pred_check
      _
    $region11: #{tpu_custom_call.1} parent=1 // pred_check_branch
      %39 = sbr.rel (0) target = $region13
    $region12: #{tpu_custom_call.1} parent=1 // pred_region
      _
    $region13: #{tpu_custom_call.1} parent=1 // pred_fallthru
      _
    // Predicated region
    $region14: #{tpu_custom_call.1} parent=1 // pred_check
      _
    $region15: #{tpu_custom_call.1} parent=1 // pred_check_branch
      %41 = sbr.rel (0) target = $region17
    $region16: #{tpu_custom_call.1} parent=1 // pred_region
      %s43 = ssub.s32 256, 256
      %44 = vsyncadd [#allocation6], %s43
      %s45 = sshll.u32 [#allocation7], 4
      %s46 = int_to_ptr.vmem [resolvable:$true] %s45
      %51 = dma.hbm_to_vmem [thread:$0]  %s3, 256, %s46, [#allocation6], 64, 64, 4
    $region17: #{tpu_custom_call.1} parent=1 // pred_fallthru
      _
    // Predicated region
    $region18: #{tpu_custom_call.1} parent=1 // pred_check
      _
    $region19: #{tpu_custom_call.1} parent=1 // pred_check_branch
      %53 = sbr.rel (0) target = $region21
    $region20: #{tpu_custom_call.1} parent=1 // pred_region
      %s55 = ssub.s32 256, 256
      %56 = vsyncadd [#allocation9], %s55
      %s57 = sshll.u32 [#allocation8], 4
      %s58 = int_to_ptr.vmem [resolvable:$true] %s57
      %63 = dma.hbm_to_vmem [thread:$0]  %s4, 256, %s58, [#allocation9], 64, 64, 4
    $region21: #{tpu_custom_call.1} parent=1 // pred_fallthru
      _
    // Predicated region
    $region22: #{tpu_custom_call.1} parent=1 // pred_check
      _
    $region23: #{tpu_custom_call.1} parent=1 // pred_check_branch
      %65 = sbr.rel (0) target = $region25
    $region24: #{tpu_custom_call.1} parent=1 // pred_region
      _
    $region25: #{tpu_custom_call.1} parent=1 // pred_fallthru
      _
    // Predicated region
    $region26: #{tpu_custom_call.1} parent=1 // pred_check
      _
    $region27: #{tpu_custom_call.1} parent=1 // pred_check_branch
      %67 = sbr.rel (0) target = $region29
    $region28: #{tpu_custom_call.1} parent=1 // pred_region
      _
    $region29: #{tpu_custom_call.1} parent=1 // pred_fallthru
      _
    // Predicated region
    $region30: #{tpu_custom_call.1} parent=1 // pred_check
      _
    $region31: #{tpu_custom_call.1} parent=1 // pred_check_branch
      %69 = sbr.rel (0) target = $region33
    $region32: #{tpu_custom_call.1} parent=1 // pred_region
      %70 = dma.done [#allocation3], 128
    $region33: #{tpu_custom_call.1} parent=1 // pred_fallthru
      _
    // Predicated region
    $region34: #{tpu_custom_call.1} parent=1 // pred_check
      _
    $region35: #{tpu_custom_call.1} parent=1 // pred_check_branch
      %72 = sbr.rel (0) target = $region37
    $region36: #{tpu_custom_call.1} parent=1 // pred_region
      %73 = dma.done [#allocation6], 256
    $region37: #{tpu_custom_call.1} parent=1 // pred_fallthru
      _
    // Predicated region
    $region38: #{tpu_custom_call.1} parent=1 // pred_check
      _
    $region39: #{tpu_custom_call.1} parent=1 // pred_check_branch
      %75 = sbr.rel (0) target = $region41
    $region40: #{tpu_custom_call.1} parent=1 // pred_region
      %76 = dma.done [#allocation6], 256
    $region41: #{tpu_custom_call.1} parent=1 // pred_fallthru
      _
    // Predicated region
    $region42: #{tpu_custom_call.1} parent=1 // pred_check
      _
    $region43: #{tpu_custom_call.1} parent=1 // pred_check_branch
      %78 = sbr.rel (0) target = $region45
    $region44: #{tpu_custom_call.1} parent=1 // pred_region
      %79 = dma.done [#allocation9], 256
    $region45: #{tpu_custom_call.1} parent=1 // pred_fallthru
      _
    %v81 = vld [vmem:[#allocation2] sm:$0xff]
    %v82 = vpack.c.bf16 %v81, %v81
    %v83 = vld [vmem:[#allocation5] sm:$0xf]
    %v84 = vld [vmem:[#allocation5 + $0x4] sm:$0xf]
    %v85 = vld [vmem:[#allocation5 + $0x8] sm:$0xf]
    %v86 = vld [vmem:[#allocation5 + $0xc] sm:$0xf]
    %v87 = vld [vmem:[%s2] sm:$0x1]
    %v89 = vlaneseq
    %v90 = vshrl.u32 %v89, 7
    %v91 = vsub.s32 0, %v90
    %v92 = vrot.slane %v87, %v91
    %v98 = vunpack.c.l.b16 %v83
    %v99 = vunpack.c.l.b16 %v84
    %v100 = vunpack.c.l.b16 %v85
    %v101 = vunpack.c.l.b16 %v86
    %v102 = vpack.c.b16 %v99, %v98
    %v103 = vpack.c.b16 %v101, %v100
    %vm106 = vcmask 261120
    %v108 = vsel %vm106, %v82, 0
    %110 = vmatprep.subr.bf16.mxu0 0
    %111 = vmatpush1.bf16.msra.mxu0 %v102
    %112 = vmatprep.subr.bf16.mxu0 0
    %113 = vmatpush1.bf16.msra.mxu0 %v103
    %114 = vmatprep.subr.bf16.mxu0 0
    %115 = vmatpush1.bf16.msra.mxu0 0
    %116 = vmatprep.subr.bf16.mxu0 0
    %117 = vmatpush1.bf16.msra.mxu0 0
    %118 = vmatprep.subr.bf16.mxu0 0
    %119 = vmatpush1.bf16.msra.mxu0 0
    %120 = vmatprep.subr.bf16.mxu0 0
    %121 = vmatpush1.bf16.msra.mxu0 0
    %122 = vmatprep.subr.bf16.mxu0 0
    %123 = vmatpush1.bf16.msra.mxu0 0
    %124 = vmatprep.subr.bf16.mxu0 0
    %125 = vmatpush1.bf16.msra.mxu0 0
    %126 = vmatprep.subr.bf16.mxu0 0
    %127 = vmatpush1.bf16.msra.mxu0 0
    %128 = vmatprep.subr.bf16.mxu0 0
    %129 = vmatpush1.bf16.msra.mxu0 0
    %130 = vmatprep.subr.bf16.mxu0 0
    %131 = vmatpush1.bf16.msra.mxu0 0
    %132 = vmatprep.subr.bf16.mxu0 0
    %133 = vmatpush1.bf16.msra.mxu0 0
    %134 = vmatprep.subr.bf16.mxu0 0
    %135 = vmatpush1.bf16.msra.mxu0 0
    %136 = vmatprep.subr.bf16.mxu0 0
    %137 = vmatpush1.bf16.msra.mxu0 0
    %138 = vmatprep.subr.bf16.mxu0 0
    %139 = vmatpush1.bf16.msra.mxu0 0
    %140 = vmatprep.subr.bf16.mxu0 0
    %141 = vmatpush1.bf16.msra.mxu0 0
    %142 = vmatprep.mubr.bf16.mxu0 0
    %143 = vmatmul.mubr.bf16.gmra.mrb[0].mxu0 %v108
    %v144 = vpop.f32.mrb[0].mxu0
    %v145 = vadd.f32 %v92, %v144
    %v146 = vpop.f32.mrb[0].mxu0
    %v147 = vpop.f32.mrb[0].mxu0
    %v148 = vpop.f32.mrb[0].mxu0
    %149 = vdwg.mxu0
    %v150 = vmul.f32 %v145, 0.01
    %v151 = vmax.f32 %v145, %v150
    %v152 = vpack.c.bf16 %v151, %v151
    %v153 = vld [vmem:[#allocation7] sm:$0xf]
    %v154 = vld [vmem:[#allocation7 + $0x4] sm:$0xf]
    %v155 = vld [vmem:[#allocation7 + $0x8] sm:$0xf]
    %v156 = vld [vmem:[#allocation7 + $0xc] sm:$0xf]
    %v157 = vld [vmem:[%s5] sm:$0x1]
    %v159 = vlaneseq
    %v160 = vshrl.u32 %v159, 7
    %v161 = vsub.s32 0, %v160
    %v162 = vrot.slane %v157, %v161
    %v168 = vunpack.c.l.b16 %v153
    %v169 = vunpack.c.l.b16 %v154
    %v170 = vunpack.c.l.b16 %v155
    %v171 = vunpack.c.l.b16 %v156
    %v172 = vpack.c.b16 %v169, %v168
    %v173 = vpack.c.b16 %v171, %v170
    %v177 = vsel %vm106, %v152, 0
    %179 = vmatprep.subr.bf16.mxu0 0
    %180 = vmatpush1.bf16.msra.mxu0 %v172
    %181 = vmatprep.subr.bf16.mxu0 0
    %182 = vmatpush1.bf16.msra.mxu0 %v173
    %183 = vmatprep.subr.bf16.mxu0 0
    %184 = vmatpush1.bf16.msra.mxu0 0
    %185 = vmatprep.subr.bf16.mxu0 0
    %186 = vmatpush1.bf16.msra.mxu0 0
    %187 = vmatprep.subr.bf16.mxu0 0
    %188 = vmatpush1.bf16.msra.mxu0 0
    %189 = vmatprep.subr.bf16.mxu0 0
    %190 = vmatpush1.bf16.msra.mxu0 0
    %191 = vmatprep.subr.bf16.mxu0 0
    %192 = vmatpush1.bf16.msra.mxu0 0
    %193 = vmatprep.subr.bf16.mxu0 0
    %194 = vmatpush1.bf16.msra.mxu0 0
    %195 = vmatprep.subr.bf16.mxu0 0
    %196 = vmatpush1.bf16.msra.mxu0 0
    %197 = vmatprep.subr.bf16.mxu0 0
    %198 = vmatpush1.bf16.msra.mxu0 0
    %199 = vmatprep.subr.bf16.mxu0 0
    %200 = vmatpush1.bf16.msra.mxu0 0
    %201 = vmatprep.subr.bf16.mxu0 0
    %202 = vmatpush1.bf16.msra.mxu0 0
    %203 = vmatprep.subr.bf16.mxu0 0
    %204 = vmatpush1.bf16.msra.mxu0 0
    %205 = vmatprep.subr.bf16.mxu0 0
    %206 = vmatpush1.bf16.msra.mxu0 0
    %207 = vmatprep.subr.bf16.mxu0 0
    %208 = vmatpush1.bf16.msra.mxu0 0
    %209 = vmatprep.subr.bf16.mxu0 0
    %210 = vmatpush1.bf16.msra.mxu0 0
    %211 = vmatprep.mubr.bf16.mxu0 0
    %212 = vmatmul.mubr.bf16.gmra.mrb[0].mxu0 %v177
    %v213 = vpop.f32.mrb[0].mxu0
    %v214 = vadd.f32 %v162, %v213
    %v215 = vpop.f32.mrb[0].mxu0
    %v216 = vpop.f32.mrb[0].mxu0
    %v217 = vpop.f32.mrb[0].mxu0
    %218 = vdwg.mxu0
    %v219 = vld [vmem:[#allocation8] sm:$0xf]
    %v220 = vld [vmem:[#allocation8 + $0x4] sm:$0xf]
    %v221 = vld [vmem:[#allocation8 + $0x8] sm:$0xf]
    %v222 = vld [vmem:[#allocation8 + $0xc] sm:$0xf]
    %v223 = vld [vmem:[%s6] sm:$0x1]
    %v225 = vlaneseq
    %v226 = vshrl.u32 %v225, 7
    %v227 = vsub.s32 0, %v226
    %v228 = vrot.slane %v223, %v227
    %231 = vrot.lane.b32.xlu0 %v152, 96
    %v232 = vpop.permute.xlu0 %231
    %v237 = vunpack.c.l.b16 %v219
    %v238 = vunpack.c.l.b16 %v220
    %v239 = vunpack.c.l.b16 %v221
    %v240 = vunpack.c.l.b16 %v222
    %v241 = vpack.c.b16 %v238, %v237
    %v242 = vpack.c.b16 %v240, %v239
    %v246 = vsel %vm106, %v232, 0
    %248 = vmatprep.subr.bf16.mxu0 0
    %249 = vmatpush1.bf16.msra.mxu0 %v241
    %250 = vmatprep.subr.bf16.mxu0 0
    %251 = vmatpush1.bf16.msra.mxu0 %v242
    %252 = vmatprep.subr.bf16.mxu0 0
    %253 = vmatpush1.bf16.msra.mxu0 0
    %254 = vmatprep.subr.bf16.mxu0 0
    %255 = vmatpush1.bf16.msra.mxu0 0
    %256 = vmatprep.subr.bf16.mxu0 0
    %257 = vmatpush1.bf16.msra.mxu0 0
    %258 = vmatprep.subr.bf16.mxu0 0
    %259 = vmatpush1.bf16.msra.mxu0 0
    %260 = vmatprep.subr.bf16.mxu0 0
    %261 = vmatpush1.bf16.msra.mxu0 0
    %262 = vmatprep.subr.bf16.mxu0 0
    %263 = vmatpush1.bf16.msra.mxu0 0
    %264 = vmatprep.subr.bf16.mxu0 0
    %265 = vmatpush1.bf16.msra.mxu0 0
    %266 = vmatprep.subr.bf16.mxu0 0
    %267 = vmatpush1.bf16.msra.mxu0 0
    %268 = vmatprep.subr.bf16.mxu0 0
    %269 = vmatpush1.bf16.msra.mxu0 0
    %270 = vmatprep.subr.bf16.mxu0 0
    %271 = vmatpush1.bf16.msra.mxu0 0
    %272 = vmatprep.subr.bf16.mxu0 0
    %273 = vmatpush1.bf16.msra.mxu0 0
    %274 = vmatprep.subr.bf16.mxu0 0
    %275 = vmatpush1.bf16.msra.mxu0 0
    %276 = vmatprep.subr.bf16.mxu0 0
    %277 = vmatpush1.bf16.msra.mxu0 0
    %278 = vmatprep.subr.bf16.mxu0 0
    %279 = vmatpush1.bf16.msra.mxu0 0
    %280 = vmatprep.mubr.bf16.mxu0 0
    %281 = vmatmul.mubr.bf16.gmra.mrb[0].mxu0 %v246
    %v282 = vpop.f32.mrb[0].mxu0
    %v283 = vadd.f32 %v228, %v282
    %v284 = vpop.f32.mrb[0].mxu0
    %v285 = vpop.f32.mrb[0].mxu0
    %v286 = vpop.f32.mrb[0].mxu0
    %287 = vdwg.mxu0
    %288 = vst [vmem:[#allocation10] sm:$0xff] %v214
    %289 = vst [vmem:[#allocation10 + $0x8] sm:$0xff] %v283
    // Predicated region
    $region46: #{tpu_custom_call.1} parent=1 // pred_check
      _
    $region47: #{tpu_custom_call.1} parent=1 // pred_check_branch
      %291 = sbr.rel (0) target = $region49
    $region48: #{tpu_custom_call.1} parent=1 // pred_region
      %s293 = ssub.s32 256, 256
      %294 = vsyncadd [#allocation4], %s293
      %s296 = sshll.u32 [#allocation10], 4
      %s297 = int_to_ptr.vmem [resolvable:$true] %s296
      %299 = dma.vmem_to_hbm [thread:$0]  %s297, 256, %s7, [#allocation4]
    $region49: #{tpu_custom_call.1} parent=1 // pred_fallthru
      _
    // Predicated region
    $region50: #{tpu_custom_call.1} parent=1 // pred_check
      _
    $region51: #{tpu_custom_call.1} parent=1 // pred_check_branch
      %301 = sbr.rel (0) target = $region53
    $region52: #{tpu_custom_call.1} parent=1 // pred_region
      %302 = dma.done [#allocation4], 256
    $region53: #{tpu_custom_call.1} parent=1 // pred_fallthru
      _
    %303 = vsyncpa [#allocation3], 1
    %304 = vsyncpa [#allocation6], 1
    %305 = vsyncpa [#allocation9], 1
    %306 = vsyncpa [#allocation4], 1

</llo_original>
